<compile_context>
chip_gen: v7x
topology: tpu7x:2x2x1
jax: 0.10.0
libtpu: 0.0.40
codegen_flags: <defaults>
</compile_context>

<pallas_src>
import jax
import jax.numpy as jnp
from jax.experimental import pallas as pl
from jax.experimental.pallas import tpu as pltpu


def _round_up(x: int, m: int) -> int:
    return (x + m - 1) // m * m


def _gmf_kernel(u_ref, i_ref, wblk_ref, b_ref, o_ref):
    """One batch tile.

    u_ref, i_ref : (tbp, Dp)   bf16 lane-packed latents (pack logical rows / packed row)
    wblk_ref     : (Dp, pack)  f32 block-diagonal Linear weight (grid-resident VMEM)
    b_ref        : (1, 1)      f32 Linear bias (SMEM scalar)
    o_ref        : (tbp, pack) f32 sigmoid predictions
    """
    bias = b_ref[0, 0]                                        # SMEM scalar read
    mf = u_ref[...].astype(jnp.float32) * i_ref[...].astype(jnp.float32)   # VPU
    # Block-diagonal matmul folds the Linear weight and the per-segment lane
    # reduction into a single MXU op; f32 accumulation.
    logits = jnp.dot(mf, wblk_ref[...],
                     preferred_element_type=jnp.float32) + bias            # MXU
    o_ref[...] = 1.0 / (1.0 + jnp.exp(-logits))                            # EUP


def gmf_forward(user_input, item_input, user_emb, item_emb, w, b, *, tb=8192):
    """user_input/item_input: int (B,); user_emb: (U, D); item_emb: (I, D);
    w: (1, D); b: (1, 1). Returns sigmoid predictions of shape (B, 1), float32.

    `tb` = logical batch rows per grid step. Defaults large (bigger, more
    efficient DMAs); it is capped so small batches still get a multi-step grid.
    """
    B = int(user_input.shape[0])
    U, D = user_emb.shape
    assert item_emb.shape[1] == D
    assert w.shape == (1, D) and b.shape == (1, 1)

    # Lane-packing factor: how many logical rows fit in one 128-lane row.
    pack = (128 // D) if (D < 128 and 128 % D == 0) else 1
    Dp = pack * D
    # bf16 packs (16, 128) per vreg -> packed rows align to 16 sublanes.
    row_align = 16 * pack

    tb = _round_up(min(tb, _round_up(B, row_align)), row_align)
    B_pad = _round_up(B, tb)

    ui = user_input.astype(jnp.int32)
    ii = item_input.astype(jnp.int32)
    if B_pad != B:
        pad = B_pad - B
        ui = jnp.concatenate([ui, jnp.zeros((pad,), jnp.int32)])
        ii = jnp.concatenate([ii, jnp.zeros((pad,), jnp.int32)])

    # Embedding gathers (XLA glue), in bf16 to halve the (B, D) HBM traffic.
    # TODO(synk): fuse the gathers into the kernel to cut the remaining round-trip.
    u_lat = jnp.take(user_emb.astype(jnp.bfloat16), ui, axis=0)   # (B_pad, D) bf16
    i_lat = jnp.take(item_emb.astype(jnp.bfloat16), ii, axis=0)   # (B_pad, D) bf16

    Bp = B_pad // pack
    tbp = tb // pack

    # Free row-major reshapes: `pack` logical rows per 128-lane packed row.
    u_p = u_lat.reshape(Bp, Dp)
    i_p = i_lat.reshape(Bp, Dp)

    # Block-diagonal weight: lanes [j*D, (j+1)*D) of a packed row reduce into
    # output column j, with the Linear weight folded in.  Shape (Dp, pack), f32.
    wblk = jnp.kron(jnp.eye(pack, dtype=jnp.float32),
                    w.astype(jnp.float32).reshape(D, 1))
    b_f32 = b.astype(jnp.float32).reshape(1, 1)

    grid = (Bp // tbp,)

    out = pl.pallas_call(
        _gmf_kernel,
        out_shape=jax.ShapeDtypeStruct((Bp, pack), jnp.float32),
        grid_spec=pltpu.PrefetchScalarGridSpec(
            num_scalar_prefetch=0,
            grid=grid,
            in_specs=[
                pl.BlockSpec((tbp, Dp), lambda i: (i, 0)),          # packed user latents
                pl.BlockSpec((tbp, Dp), lambda i: (i, 0)),          # packed item latents
                pl.BlockSpec((Dp, pack), lambda i: (0, 0)),         # block-diag weight (resident)
                pl.BlockSpec(memory_space=pltpu.MemorySpace.SMEM),  # bias scalar
            ],
            out_specs=pl.BlockSpec((tbp, pack), lambda i: (i, 0)),
        ),
        compiler_params=pltpu.CompilerParams(
            dimension_semantics=("parallel",),
        ),
    )(u_p, i_p, wblk, b_f32)

    return out.reshape(B_pad, 1)[:B]


def _reference(user_input, item_input, user_emb, item_emb, w, b):
    u_lat = jnp.take(user_emb, user_input, axis=0)
    i_lat = jnp.take(item_emb, item_input, axis=0)
    mf = u_lat * i_lat
    return jax.nn.sigmoid(jnp.sum(mf * w, axis=-1, keepdims=True) + b[0, 0])


if __name__ == "__main__":
    num_users, num_items, mf_dim = 512, 512, 32
    batch = 512

    key = jax.random.PRNGKey(0)
    k_ue, k_ie, k_w, k_b, k_u, k_i = jax.random.split(key, 6)

    # Embeddings ~ N(0, 0.01) as in _init_weight_; Linear params deterministic too.
    user_emb = 0.01 * jax.random.normal(k_ue, (num_users, mf_dim), jnp.float32)
    item_emb = 0.01 * jax.random.normal(k_ie, (num_items, mf_dim), jnp.float32)
    bound = 1.0 / (mf_dim ** 0.5)
    w = jax.random.uniform(k_w, (1, mf_dim), jnp.float32, -bound, bound)
    b = jax.random.uniform(k_b, (1, 1), jnp.float32, -bound, bound)

    user_input = jax.random.randint(k_u, (batch,), 0, num_users, jnp.int32)
    item_input = jax.random.randint(k_i, (batch,), 0, num_items, jnp.int32)

    # tb=128 logical rows -> packed tiles of (32, 128) and a 4-step grid (keeps
    # both v7x TCs fed at this small demo batch; production batches use the
    # large default tb).
    out = gmf_forward(user_input, item_input, user_emb, item_emb, w, b, tb=128)
    out = jax.block_until_ready(out)

    ref = _reference(user_input, item_input, user_emb, item_emb, w, b)
    assert out.shape == (batch, 1)
    # bf16 latent stream (f32 accumulation) -> slightly looser tolerance.
    assert jnp.allclose(out, ref, atol=2e-3, rtol=2e-3), "mismatch vs reference"

    print("KERNEL_OK")
</pallas_src>

<mosaic_0001>
module attributes {stable_mosaic.version = 11 : i64} {
  func.func @_gmf_kernel(%arg0: i32, %arg1: memref<32x128xbf16, #tpu.memory_space<vmem>>, %arg2: memref<32x128xbf16, #tpu.memory_space<vmem>>, %arg3: memref<128x4xf32, #tpu.memory_space<vmem>>, %arg4: memref<1x1xf32, #tpu.memory_space<smem>>, %arg5: memref<32x4xf32, #tpu.memory_space<vmem>>) attributes {dimension_semantics = [#tpu.dimension_semantics<parallel>], iteration_bounds = array<i64: 4>, scalar_prefetch = 0 : i64, scratch_operands = 0 : i64, tpu.core_type = #tpu.core_type<tc>, window_params = [{transform_indices = @transform_0, window_bounds = array<i64: 32, 128>}, {transform_indices = @transform_1, window_bounds = array<i64: 32, 128>}, {pipeline_mode = #tpu.pipeline_mode<synchronous>, transform_indices = @transform_2, window_bounds = array<i64: 128, 4>}, {transform_indices = @transform_3, window_bounds = array<i64: 1, 1>}, {transform_indices = @transform_4, window_bounds = array<i64: 32, 4>}]} {
    %c0 = arith.constant 0 : index
    %c0_0 = arith.constant 0 : index
    %0 = memref.load %arg4[%c0, %c0_0] : memref<1x1xf32, #tpu.memory_space<smem>>
    %c0_1 = arith.constant 0 : index
    %c0_2 = arith.constant 0 : index
    %1 = vector.load %arg1[%c0_1, %c0_2] : memref<32x128xbf16, #tpu.memory_space<vmem>>, vector<32x128xbf16>
    %2 = arith.extf %1 : vector<32x128xbf16> to vector<32x128xf32>
    %c0_3 = arith.constant 0 : index
    %c0_4 = arith.constant 0 : index
    %3 = vector.load %arg2[%c0_3, %c0_4] : memref<32x128xbf16, #tpu.memory_space<vmem>>, vector<32x128xbf16>
    %4 = arith.extf %3 : vector<32x128xbf16> to vector<32x128xf32>
    %5 = arith.mulf %2, %4 : vector<32x128xf32>
    %c0_5 = arith.constant 0 : index
    %c0_6 = arith.constant 0 : index
    %6 = vector.load %arg3[%c0_5, %c0_6] : memref<128x4xf32, #tpu.memory_space<vmem>>, vector<128x4xf32>
    %cst = arith.constant dense<0.000000e+00> : vector<32x4xf32>
    %7 = tpu.matmul %5, %6, %cst {dimension_numbers = #tpu.dot_dimension_numbers<[1], [0], [0], [1], [0, 0, 1, 1], [], []>} : vector<32x128xf32>, vector<128x4xf32>, vector<32x4xf32> -> vector<32x4xf32>
    %8 = vector.broadcast %0 : f32 to vector<32x4xf32>
    %9 = arith.addf %7, %8 : vector<32x4xf32>
    %cst_7 = arith.constant 0.000000e+00 : f32
    %10 = vector.broadcast %cst_7 : f32 to vector<32x4xf32>
    %11 = arith.subf %10, %9 : vector<32x4xf32>
    %12 = math.exp %11 : vector<32x4xf32>
    %cst_8 = arith.constant 1.000000e+00 : f32
    %13 = vector.broadcast %cst_8 : f32 to vector<32x4xf32>
    %14 = arith.addf %13, %12 : vector<32x4xf32>
    %cst_9 = arith.constant 1.000000e+00 : f32
    %15 = vector.broadcast %cst_9 : f32 to vector<32x4xf32>
    %16 = arith.divf %15, %14 : vector<32x4xf32>
    %c0_10 = arith.constant 0 : index
    %c0_11 = arith.constant 0 : index
    %17 = vector.load %arg5[%c0_10, %c0_11] : memref<32x4xf32, #tpu.memory_space<vmem>>, vector<32x4xf32>
    tpu.vector_store %arg5[%c0_10, %c0_11], %16 {strides = array<i32>} : memref<32x4xf32, #tpu.memory_space<vmem>>, vector<32x4xf32>,
    return
  }
  func.func @transform_0(%arg0: i32) -> (i32, i32) {
    %c0_i32 = arith.constant 0 : i32
    %c0_i32_0 = arith.constant 0 : i32
    return %arg0, %c0_i32 : i32, i32
  }
  func.func @transform_1(%arg0: i32) -> (i32, i32) {
    %c0_i32 = arith.constant 0 : i32
    %c0_i32_0 = arith.constant 0 : i32
    return %arg0, %c0_i32 : i32, i32
  }
  func.func @transform_2(%arg0: i32) -> (i32, i32) {
    %c0_i32 = arith.constant 0 : i32
    %c0_i32_0 = arith.constant 0 : i32
    %c0_i32_1 = arith.constant 0 : i32
    return %c0_i32, %c0_i32_0 : i32, i32
  }
  func.func @transform_3(%arg0: i32) -> (i32, i32) {
    %c0_i32 = arith.constant 0 : i32
    %c0_i32_0 = arith.constant 0 : i32
    %c0_i32_1 = arith.constant 0 : i32
    return %c0_i32, %c0_i32_0 : i32, i32
  }
  func.func @transform_4(%arg0: i32) -> (i32, i32) {
    %c0_i32 = arith.constant 0 : i32
    %c0_i32_0 = arith.constant 0 : i32
    return %arg0, %c0_i32 : i32, i32
  }
}

</mosaic_0001>

<llo_original>
// kernel: tpu_custom_call.1
$region0: #{tpu_custom_call.1}
  #allocation0 [shape = 'u32[]', space=smem, size = 0x4, offset = 0x4, fixed_abs, tag = 'smem constant byte address 0x4 - core index']
  #allocation1 [shape = 'u32[144,128]{1,0:T(1,128)}', space=vmem, size = 0x12000, scoped, tag = 'internal scratch']
  #allocation2 [shape = 'f32[1,1]{1,0:T(1,128)S(6)}', space=smem, size = 0x200, scoped, tag = 'scoped memory for tpu_custom_call.1']
  %s0 = inlined_call_operand.vmem [shape: bf16[128,128], index: 0, kind: input, shape index: {}]
  %s1 = inlined_call_operand.vmem [shape: bf16[128,128], index: 1, kind: input, shape index: {}]
  %s2 = inlined_call_operand.vmem [shape: f32[128,4], index: 2, kind: input, shape index: {}]
  %s3 = inlined_call_operand.<no memory space> [shape: f32[1,1], index: 3, kind: input, shape index: {}]
  %s4 = inlined_call_operand.vmem [shape: f32[128,4], index: 4, kind: output, shape index: {}]
  %s5 = sld [smem:[#allocation0]]
  $region49: #{tpu_custom_call.1} parent=0
    _
  %s7 = ssub.s32 1, %s5
  %s8 = scalar_select 0, %s7, %s5
  %9 = sst [smem:[#allocation2]] %s3
  loop: start=0, step=1, limit=6
  $region2: #{tpu_custom_call.1} parent=0 // loop_pre_header
    _
  $region3: #{tpu_custom_call.1} parent=0 // loop_header
    %s11 = sphi 0, %s15
    %p12 = scmp.ge.s32.totalorder %s11, 6
    %s21 = sphi 0, %s23
    %s24 = sphi 0, %s21
    %s25 = sphi 0, %s24
    %s41 = sphi 0, %s25
    %s47 = sphi 0, %s49
    %s50 = sphi 0, %s47
    %s51 = sphi 0, %s50
    %s67 = sphi 0, %s51
    %s71 = sphi 0, %s71
    %s73 = sphi 0, %s71
    %s74 = sphi 0, %s73
    %s88 = sphi 0, %s74
    %s92 = sphi 0, %s92
    %s94 = sphi 0, %s92
    %s95 = sphi 0, %s94
    %s109 = sphi 0, %s95
    %s115 = sphi 0, %s117
    %s118 = sphi 0, %s115
    %s119 = sphi 0, %s118
    %s135 = sphi 0, %s119
  $region4: #{tpu_custom_call.1} parent=0 // loop_header_branch
    %14 = sbr.rel (%p12) target = $region8
  $region5: #{tpu_custom_call.1} parent=0 // loop_body
    %s16 = ssub.s32 %s11, 1
    %s17 = ssub.s32 %s11, 2
    %s18 = sadd.s32 %s11, 1
    %s19 = ssub.s32 %s11, %s18
    %p20 = scmp.eq.s32.totalorder %s19, 0
    %s22 = sadd.s32 %s21, 1
    %s23 = scalar_select %p20, %s21, %s22
    %p26 = pneg %p20
    %p27 = scmp.eq.s32.totalorder %s11, 3
    %p28 = por %p26, %p27
    %p29 = scmp.ne.s32.totalorder %s21, %s24
    %p30 = scmp.eq.s32.totalorder %s11, 0
    %p31 = por %p29, %p30
    %p32 = scmp.ne.s32.totalorder %s21, %s24
    %p33 = scmp.eq.s32.totalorder %s16, 3
    %p34 = por %p32, %p33
    %p35 = scmp.ne.s32.totalorder %s24, %s25
    %p36 = scmp.eq.s32.totalorder %s16, 0
    %p37 = por %p35, %p36
    %p38 = scmp.ne.s32.totalorder %s24, %s25
    %p39 = scmp.eq.s32.totalorder %s17, 3
    %p40 = por %p38, %p39
    %p42 = scmp.ne.s32.totalorder %s25, %s41
    %p43 = scmp.eq.s32.totalorder %s17, 0
    %p44 = por %p42, %p43
    %s45 = ssub.s32 %s11, %s18
    %p46 = scmp.eq.s32.totalorder %s45, 0
    %s48 = sadd.s32 %s47, 1
    %s49 = scalar_select %p46, %s47, %s48
    %p52 = pneg %p46
    %p53 = scmp.eq.s32.totalorder %s11, 3
    %p54 = por %p52, %p53
    %p55 = scmp.ne.s32.totalorder %s47, %s50
    %p56 = scmp.eq.s32.totalorder %s11, 0
    %p57 = por %p55, %p56
    %p58 = scmp.ne.s32.totalorder %s47, %s50
    %p59 = scmp.eq.s32.totalorder %s16, 3
    %p60 = por %p58, %p59
    %p61 = scmp.ne.s32.totalorder %s50, %s51
    %p62 = scmp.eq.s32.totalorder %s16, 0
    %p63 = por %p61, %p62
    %p64 = scmp.ne.s32.totalorder %s50, %s51
    %p65 = scmp.eq.s32.totalorder %s17, 3
    %p66 = por %p64, %p65
    %p68 = scmp.ne.s32.totalorder %s51, %s67
    %p69 = scmp.eq.s32.totalorder %s17, 0
    %p70 = por %p68, %p69
    %s72 = sadd.s32 %s71, 1
    %p75 = scmp.eq.s32.totalorder %s11, 3
    %p76 = scmp.ne.s32.totalorder %s71, %s73
    %p77 = scmp.eq.s32.totalorder %s11, 0
    %p78 = por %p76, %p77
    %p79 = scmp.ne.s32.totalorder %s71, %s73
    %p80 = scmp.eq.s32.totalorder %s16, 3
    %p81 = por %p79, %p80
    %p82 = scmp.ne.s32.totalorder %s73, %s74
    %p83 = scmp.eq.s32.totalorder %s16, 0
    %p84 = por %p82, %p83
    %p85 = scmp.ne.s32.totalorder %s73, %s74
    %p86 = scmp.eq.s32.totalorder %s17, 3
    %p87 = por %p85, %p86
    %p89 = scmp.ne.s32.totalorder %s74, %s88
    %p90 = scmp.eq.s32.totalorder %s17, 0
    %p91 = por %p89, %p90
    %s93 = sadd.s32 %s92, 1
    %p96 = scmp.eq.s32.totalorder %s11, 3
    %p97 = scmp.ne.s32.totalorder %s92, %s94
    %p98 = scmp.eq.s32.totalorder %s11, 0
    %p99 = por %p97, %p98
    %p100 = scmp.ne.s32.totalorder %s92, %s94
    %p101 = scmp.eq.s32.totalorder %s16, 3
    %p102 = por %p100, %p101
    %p103 = scmp.ne.s32.totalorder %s94, %s95
    %p104 = scmp.eq.s32.totalorder %s16, 0
    %p105 = por %p103, %p104
    %p106 = scmp.ne.s32.totalorder %s94, %s95
    %p107 = scmp.eq.s32.totalorder %s17, 3
    %p108 = por %p106, %p107
    %p110 = scmp.ne.s32.totalorder %s95, %s109
    %p111 = scmp.eq.s32.totalorder %s17, 0
    %p112 = por %p110, %p111
    %s113 = ssub.s32 %s11, %s18
    %p114 = scmp.eq.s32.totalorder %s113, 0
    %s116 = sadd.s32 %s115, 1
    %s117 = scalar_select %p114, %s115, %s116
    %p120 = pneg %p114
    %p121 = scmp.eq.s32.totalorder %s11, 3
    %p122 = por %p120, %p121
    %p123 = scmp.ne.s32.totalorder %s115, %s118
    %p124 = scmp.eq.s32.totalorder %s11, 0
    %p125 = por %p123, %p124
    %p126 = scmp.ne.s32.totalorder %s115, %s118
    %p127 = scmp.eq.s32.totalorder %s16, 3
    %p128 = por %p126, %p127
    %p129 = scmp.ne.s32.totalorder %s118, %s119
    %p130 = scmp.eq.s32.totalorder %s16, 0
    %p131 = por %p129, %p130
    %p132 = scmp.ne.s32.totalorder %s118, %s119
    %p133 = scmp.eq.s32.totalorder %s17, 3
    %p134 = por %p132, %p133
    %p136 = scmp.ne.s32.totalorder %s119, %s135
    %p137 = scmp.eq.s32.totalorder %s17, 0
    %p138 = por %p136, %p137
    %p139 = scmp.le.s32.totalorder 1, %s11
    %p140 = scmp.lt.s32.totalorder %s11, 5
    %p141 = pnand %p139, %p140
    %p142 = pneg %p141
    // Predicated region
    $region9: #{tpu_custom_call.1} parent=5 // pred_check
      _
    $region10: #{tpu_custom_call.1} parent=5 // pred_check_branch
      %144 = sbr.rel (%p141) target = $region12
    $region11: #{tpu_custom_call.1} parent=5 // pred_region
      %s145 = ssub.s32 %s11, 1
      // Predicated region
      $region13: #{tpu_custom_call.1} parent=11 // pred_check
        %p146 = pneg %p84
      $region14: #{tpu_custom_call.1} parent=11 // pred_check_branch
        %148 = sbr.rel (%p146) target = $region16
      $region15: #{tpu_custom_call.1} parent=11 // pred_region
        _
      $region16: #{tpu_custom_call.1} parent=11 // pred_fallthru
        _
      // Predicated region
      $region17: #{tpu_custom_call.1} parent=11 // pred_check
        %p149 = pneg %p105
      $region18: #{tpu_custom_call.1} parent=11 // pred_check_branch
        %151 = sbr.rel (%p149) target = $region20
      $region19: #{tpu_custom_call.1} parent=11 // pred_region
        _
      $region20: #{tpu_custom_call.1} parent=11 // pred_fallthru
        _
    $region12: #{tpu_custom_call.1} parent=5 // pred_fallthru
      _
    %p152 = scmp.lt.s32.totalorder %s11, 4
    // Predicated region
    $region21: #{tpu_custom_call.1} parent=5 // pred_check
      %p153 = pneg %p152
    $region22: #{tpu_custom_call.1} parent=5 // pred_check_branch
      %155 = sbr.rel (%p153) target = $region24
    $region23: #{tpu_custom_call.1} parent=5 // pred_region
      // Predicated region
      $region25: #{tpu_custom_call.1} parent=23 // pred_check
        %p156 = pneg %p31
      $region26: #{tpu_custom_call.1} parent=23 // pred_check_branch
        %158 = sbr.rel (%p156) target = $region28
      $region27: #{tpu_custom_call.1} parent=23 // pred_region
        %s159 = smul.u32 4, %s11
        %p160 = scmp.lt.s32.totalorder %s159, 15
        %s161 = scalar_select %p160, %s159, 15
        %s162 = smul.addr %s161, 4
        %s163 = scalar_lea.vmem %s0, %s162
        %s164 = smul.u32 4, %s11
      $region28: #{tpu_custom_call.1} parent=23 // pred_fallthru
        _
      // Predicated region
      $region29: #{tpu_custom_call.1} parent=23 // pred_check
        %p165 = pneg %p57
      $region30: #{tpu_custom_call.1} parent=23 // pred_check_branch
        %167 = sbr.rel (%p165) target = $region32
      $region31: #{tpu_custom_call.1} parent=23 // pred_region
        %s168 = smul.u32 4, %s11
        %p169 = scmp.lt.s32.totalorder %s168, 15
        %s170 = scalar_select %p169, %s168, 15
        %s171 = smul.addr %s170, 4
        %s172 = scalar_lea.vmem %s1, %s171
        %s173 = smul.u32 4, %s11
      $region32: #{tpu_custom_call.1} parent=23 // pred_fallthru
        _
    $region24: #{tpu_custom_call.1} parent=5 // pred_fallthru
      _
    %p174 = scmp.le.s32.totalorder 1, %s11
    %p175 = scmp.lt.s32.totalorder %s11, 5
    %p176 = pnand %p174, %p175
    %p177 = pneg %p176
    // Predicated region
    $region33: #{tpu_custom_call.1} parent=5 // pred_check
      _
    $region34: #{tpu_custom_call.1} parent=5 // pred_check_branch
      %179 = sbr.rel (%p176) target = $region36
    $region35: #{tpu_custom_call.1} parent=5 // pred_region
      %s180 = ssub.s32 %s11, 1
      %s181 = smul.u32 4, %s16
      %p182 = scmp.lt.s32.totalorder %s181, 15
      %s183 = scalar_select %p182, %s181, 15
      %s184 = smul.addr %s183, 4
      %s185 = scalar_lea.vmem %s0, %s184
      %p186 = pneg %p37
      %p187 = pneg %p34
      %s188 = smul.u32 4, %s16
      %p189 = scmp.lt.s32.totalorder %s188, 15
      %s190 = scalar_select %p189, %s188, 15
      %s191 = smul.addr %s190, 4
      %s192 = scalar_lea.vmem %s1, %s191
      %p193 = pneg %p63
      %p194 = pneg %p60
      %p195 = pneg %p84
      %p196 = pneg %p81
      %p197 = pneg %p105
      %p198 = pneg %p102
      %p199 = pneg %p131
      %p200 = pneg %p128
      %s201 = smul.u32 4, %s16
      %p202 = scmp.lt.s32.totalorder %s201, 15
      %s203 = scalar_select %p202, %s201, 15
      %s204 = smul.addr %s203, 8
      %s205 = scalar_lea.vmem %s4, %s204
      %s206 = smul.u32 4, %s16
      %p207 = scmp.lt.s32.totalorder %s206, 15
      %s208 = scalar_select %p207, %s206, 15
      %s209 = smul.addr %s208, 4
      %s210 = scalar_lea.vmem %s0, %s209
      %s211 = smul.u32 4, %s16
      %s212 = smul.u32 4, %s16
      %p213 = scmp.lt.s32.totalorder %s212, 15
      %s214 = scalar_select %p213, %s212, 15
      %s215 = smul.addr %s214, 4
      %s216 = scalar_lea.vmem %s1, %s215
      %s217 = smul.u32 4, %s16
      %s218 = smul.u32 4, %s16
      %p219 = scmp.lt.s32.totalorder %s218, 15
      %s220 = scalar_select %p219, %s218, 15
      %s221 = smul.addr %s220, 8
      %s222 = scalar_lea.vmem %s4, %s221
      %s223 = smul.u32 4, %s16
      %s224 = sld [smem:[#allocation2]]
      %v225 = vld [vmem:[%s210] sm:$0xf]
      %v226 = vld [vmem:[%s210 + $0x4] sm:$0xf]
      %v227 = vld [vmem:[%s210 + $0x8] sm:$0xf]
      %v228 = vld [vmem:[%s210 + $0xc] sm:$0xf]
      %v229 = vunpack.c.l.bf16 %v225
      %v230 = vunpack.c.l.bf16 %v226
      %v231 = vunpack.c.l.bf16 %v227
      %v232 = vunpack.c.l.bf16 %v228
      %v233 = vld [vmem:[%s216] sm:$0xf]
      %v234 = vld [vmem:[%s216 + $0x4] sm:$0xf]
      %v235 = vld [vmem:[%s216 + $0x8] sm:$0xf]
      %v236 = vld [vmem:[%s216 + $0xc] sm:$0xf]
      %v237 = vunpack.c.l.bf16 %v233
      %v238 = vunpack.c.l.bf16 %v234
      %v239 = vunpack.c.l.bf16 %v235
      %v240 = vunpack.c.l.bf16 %v236
      %v241 = vmul.f32 %v229, %v237
      %v242 = vmul.f32 %v230, %v238
      %v243 = vmul.f32 %v231, %v239
      %v244 = vmul.f32 %v232, %v240
      %v245 = vld [vmem:[%s2] sm:$0xff]
      %v246 = vld [vmem:[%s2 + $0x8] sm:$0xff]
      %v247 = vld [vmem:[%s2 + $0x10] sm:$0xff]
      %v248 = vld [vmem:[%s2 + $0x18] sm:$0xff]
      %v249 = vld [vmem:[%s2 + $0x20] sm:$0xff]
      %v250 = vld [vmem:[%s2 + $0x28] sm:$0xff]
      %v251 = vld [vmem:[%s2 + $0x30] sm:$0xff]
      %v252 = vld [vmem:[%s2 + $0x38] sm:$0xff]
      %v253 = vld [vmem:[%s2 + $0x40] sm:$0xff]
      %v254 = vld [vmem:[%s2 + $0x48] sm:$0xff]
      %v255 = vld [vmem:[%s2 + $0x50] sm:$0xff]
      %v256 = vld [vmem:[%s2 + $0x58] sm:$0xff]
      %v257 = vld [vmem:[%s2 + $0x60] sm:$0xff]
      %v258 = vld [vmem:[%s2 + $0x68] sm:$0xff]
      %v259 = vld [vmem:[%s2 + $0x70] sm:$0xff]
      %v260 = vld [vmem:[%s2 + $0x78] sm:$0xff]
      %v261 = vstv %s224
      %262 = vmatprep.subr.mxu0 0.0
      %263 = vmatpush1.msra.mxu0 %v245
      %264 = vmatprep.subr.mxu0 0.0
      %265 = vmatpush1.msra.mxu0 %v246
      %266 = vmatprep.subr.mxu0 0.0
      %267 = vmatpush1.msra.mxu0 %v247
      %268 = vmatprep.subr.mxu0 0.0
      %269 = vmatpush1.msra.mxu0 %v248
      %270 = vmatprep.subr.mxu0 0.0
      %271 = vmatpush1.msra.mxu0 %v249
      %272 = vmatprep.subr.mxu0 0.0
      %273 = vmatpush1.msra.mxu0 %v250
      %274 = vmatprep.subr.mxu0 0.0
      %275 = vmatpush1.msra.mxu0 %v251
      %276 = vmatprep.subr.mxu0 0.0
      %277 = vmatpush1.msra.mxu0 %v252
      %278 = vmatprep.subr.mxu0 0.0
      %279 = vmatpush1.msra.mxu0 %v253
      %280 = vmatprep.subr.mxu0 0.0
      %281 = vmatpush1.msra.mxu0 %v254
      %282 = vmatprep.subr.mxu0 0.0
      %283 = vmatpush1.msra.mxu0 %v255
      %284 = vmatprep.subr.mxu0 0.0
      %285 = vmatpush1.msra.mxu0 %v256
      %286 = vmatprep.subr.mxu0 0.0
      %287 = vmatpush1.msra.mxu0 %v257
      %288 = vmatprep.subr.mxu0 0.0
      %289 = vmatpush1.msra.mxu0 %v258
      %290 = vmatprep.subr.mxu0 0.0
      %291 = vmatpush1.msra.mxu0 %v259
      %292 = vmatprep.subr.mxu0 0.0
      %293 = vmatpush1.msra.mxu0 %v260
      %294 = vmatprep.subr.mxu0 0.0
      %295 = vmatpush1.msra.mxu0 0.0
      %296 = vmatprep.subr.mxu0 0.0
      %297 = vmatpush1.msra.mxu0 0.0
      %298 = vmatprep.subr.mxu0 0.0
      %299 = vmatpush1.msra.mxu0 0.0
      %300 = vmatprep.subr.mxu0 0.0
      %301 = vmatpush1.msra.mxu0 0.0
      %302 = vmatprep.subr.mxu0 0.0
      %303 = vmatpush1.msra.mxu0 0.0
      %304 = vmatprep.subr.mxu0 0.0
      %305 = vmatpush1.msra.mxu0 0.0
      %306 = vmatprep.subr.mxu0 0.0
      %307 = vmatpush1.msra.mxu0 0.0
      %308 = vmatprep.subr.mxu0 0.0
      %309 = vmatpush1.msra.mxu0 0.0
      %310 = vmatprep.subr.mxu0 0.0
      %311 = vmatpush1.msra.mxu0 0.0
      %312 = vmatprep.subr.mxu0 0.0
      %313 = vmatpush1.msra.mxu0 0.0
      %314 = vmatprep.subr.mxu0 0.0
      %315 = vmatpush1.msra.mxu0 0.0
      %316 = vmatprep.subr.mxu0 0.0
      %317 = vmatpush1.msra.mxu0 0.0
      %318 = vmatprep.subr.mxu0 0.0
      %319 = vmatpush1.msra.mxu0 0.0
      %320 = vmatprep.subr.mxu0 0.0
      %321 = vmatpush1.msra.mxu0 0.0
      %322 = vmatprep.subr.mxu0 0.0
      %323 = vmatpush1.msra.mxu0 0.0
      %324 = vmatprep.subr.mxu0 0.0
      %325 = vmatpush1.msra.mxu0 0.0
      %326 = vmatprep.mubr.f32.mxu0 0.0
      %327 = vmatmul.mubr.f32.gmra.mrb[0].mxu0 %v241
      %v328 = vpop.f32.mrb[0].mxu0
      %v329 = vadd.f32 %v261, %v328
      %v330 = vpop.f32.mrb[0].mxu0
      %331 = vmatprep.mubr.f32.mxu0 0.0
      %332 = vmatmul.mubr.f32.gmra.mrb[0].mxu0 %v242
      %v333 = vpop.f32.mrb[0].mxu0
      %v334 = vadd.f32 %v261, %v333
      %v335 = vpop.f32.mrb[0].mxu0
      %336 = vmatprep.mubr.f32.mxu0 0.0
      %337 = vmatmul.mubr.f32.gmra.mrb[0].mxu0 %v243
      %v338 = vpop.f32.mrb[0].mxu0
      %v339 = vadd.f32 %v261, %v338
      %v340 = vpop.f32.mrb[0].mxu0
      %341 = vmatprep.mubr.f32.mxu0 0.0
      %342 = vmatmul.mubr.f32.gmra.mrb[0].mxu0 %v244
      %v343 = vpop.f32.mrb[0].mxu0
      %v344 = vadd.f32 %v261, %v343
      %v345 = vpop.f32.mrb[0].mxu0
      %346 = vdwg.mxu0
      %v347 = vsub.f32 0.0, %v329
      %v348 = vsub.f32 0.0, %v334
      %v349 = vsub.f32 0.0, %v339
      %v350 = vsub.f32 0.0, %v344
      %v351 = vmul.f32 %v347, 1.442695
      %v352 = vpow.pop %v351
      %v353 = vmul.f32 %v348, 1.442695
      %v354 = vpow.pop %v353
      %v355 = vmul.f32 %v349, 1.442695
      %v356 = vpow.pop %v355
      %v357 = vmul.f32 %v350, 1.442695
      %v358 = vpow.pop %v357
      %v359 = vadd.f32 %v352, 1.0
      %v360 = vadd.f32 %v354, 1.0
      %v361 = vadd.f32 %v356, 1.0
      %v362 = vadd.f32 %v358, 1.0
      %v363 = vrcp.pop %v359
      %v364 = vmul.f32 1.0, %v363
      %v365 = vrcp.pop %v360
      %v366 = vmul.f32 1.0, %v365
      %v367 = vrcp.pop %v361
      %v368 = vmul.f32 1.0, %v367
      %v369 = vrcp.pop %v362
      %v370 = vmul.f32 1.0, %v369
      %vm371 = vcmask 31744
      %372 = vst.msk [vmem:[%s222] sm:$0xff] %vm371, %v364
      %373 = vst.msk [vmem:[%s222 + $0x8] sm:$0xff] %vm371, %v366
      %374 = vst.msk [vmem:[%s222 + $0x10] sm:$0xff] %vm371, %v368
      %375 = vst.msk [vmem:[%s222 + $0x18] sm:$0xff] %vm371, %v370
      %s376 = smul.u32 4, %s16
      %p377 = scmp.lt.s32.totalorder %s376, 15
      %s378 = scalar_select %p377, %s376, 15
      %s379 = smul.addr %s378, 8
      %s380 = scalar_lea.vmem %s4, %s379
      // Predicated region
      $region37: #{tpu_custom_call.1} parent=35 // pred_check
        %p381 = pneg %p128
      $region38: #{tpu_custom_call.1} parent=35 // pred_check_branch
        %383 = sbr.rel (%p381) target = $region40
      $region39: #{tpu_custom_call.1} parent=35 // pred_region
        %s384 = smul.u32 4, %s16
      $region40: #{tpu_custom_call.1} parent=35 // pred_fallthru
        _
    $region36: #{tpu_custom_call.1} parent=5 // pred_fallthru
      _
    %p385 = scmp.le.s32.totalorder 2, %s11
    // Predicated region
    $region41: #{tpu_custom_call.1} parent=5 // pred_check
      %p386 = pneg %p385
    $region42: #{tpu_custom_call.1} parent=5 // pred_check_branch
      %388 = sbr.rel (%p386) target = $region44
    $region43: #{tpu_custom_call.1} parent=5 // pred_region
      %s389 = ssub.s32 %s11, 2
      // Predicated region
      $region45: #{tpu_custom_call.1} parent=43 // pred_check
        %p390 = pneg %p134
      $region46: #{tpu_custom_call.1} parent=43 // pred_check_branch
        %392 = sbr.rel (%p390) target = $region48
      $region47: #{tpu_custom_call.1} parent=43 // pred_region
        %s393 = smul.u32 4, %s17
        %p394 = scmp.lt.s32.totalorder %s393, 15
        %s395 = scalar_select %p394, %s393, 15
        %s396 = smul.addr %s395, 8
        %s397 = scalar_lea.vmem %s4, %s396
      $region48: #{tpu_custom_call.1} parent=43 // pred_fallthru
        _
    $region44: #{tpu_custom_call.1} parent=5 // pred_fallthru
      _
  $region6: #{tpu_custom_call.1} parent=0 // loop_footer
    %s15 = sadd.s32 1, %s11
  $region7: #{tpu_custom_call.1} parent=0 // loop_footer_branch
    %10 = sbr.rel target = $region3
  $region8: #{tpu_custom_call.1} parent=0 // loop_exit
    _

</llo_original>
